<compile_context>
chip_gen: v5e
topology: v5e:2x2
jax: 0.10.0
libtpu: 0.0.40
codegen_flags: <defaults>
</compile_context>

<pallas_src>
import math

import jax
import jax.numpy as jnp
from jax.experimental import pallas as pl
from jax.experimental.pallas import tpu as pltpu

_LANE = 512                      # lane-dense width (multiple of 128)
_TM_TARGET = 1024                # target rows/tile -> 2 MiB per f32 input block
_VMEM_LIMIT = 32 * 1024 * 1024   # 4 inputs x 2 bufs x ~2 MiB ≈ 17 MiB  (< 32 MiB)


def _num_tensorcores():
    """2 on megacore chips (v4 / v5p / v7x), else 1 (v5e / v6e)."""
    try:
        kind = jax.devices()[0].device_kind.lower()
    except Exception:
        return 1
    return 2 if any(t in kind for t in ("v4", "v5p", "v7")) else 1


def _make_kernel(rows, tm, n_inner, need_mask):
    def kernel(mu_p_ref, logvar_p_ref, mu_q_ref, logvar_q_ref, out_ref, acc_ref):
        i = pl.program_id(1)

        @pl.when(i == 0)
        def _():
            acc_ref[...] = jnp.zeros_like(acc_ref)

        mu_p = mu_p_ref[...].astype(jnp.float32)
        lvp = logvar_p_ref[...].astype(jnp.float32)
        mu_q = mu_q_ref[...].astype(jnp.float32)
        lvq = logvar_q_ref[...].astype(jnp.float32)

        inv_sigma_p_sq = jnp.exp(-lvp)       # 1 / sigma_p^2  (EUP)
        sigma_q_sq = jnp.exp(lvq)            # sigma_q^2      (EUP)
        diff = mu_p - mu_q
        kl = 0.5 * ((sigma_q_sq + diff * diff) * inv_sigma_p_sq
                    - 1.0 + (lvp - lvq))

        if need_mask:
            # Rows at/after `rows` are either Pallas partial-block garbage or a
            # clamped re-read of the last real block (phantom grid step). Zero
            # them; `rows` is a static trace-time constant (no scalar prefetch).
            start = (pl.program_id(0) * n_inner + i) * tm
            row_id = start + jax.lax.broadcasted_iota(jnp.int32, (tm, 1), 0)
            kl = jnp.where(row_id < rows, kl, 0.0)

        # VPU-only partial reduction into the (8, _LANE) accumulator; the
        # cross-lane / cross-sublane (XLU) collapse is deferred to the epilogue.
        main = (tm // 8) * 8
        if main:
            blk = kl if main == tm else kl[:main]
            acc_ref[...] += blk.reshape(main // 8, 8, _LANE).sum(axis=0)
        if main != tm:  # tiny single-tile inputs whose row count isn't 8-aligned
            acc_ref[: tm - main, :] += kl[main:]

        @pl.when(i == n_inner - 1)
        def _():
            out_ref[0] = acc_ref[...]

    return kernel


def gaussian_kl_divergence_loss(mu_p, logvar_p, mu_q, logvar_q,
                                tm_target=_TM_TARGET):
    shape = mu_p.shape
    n_elems = math.prod(shape)
    n_rows_mean = math.prod(shape[:-1])       # (b a k) -> divisor of the mean

    # --- lane-dense (rows, 512) view; pad only a ragged tail -----------------
    pad = (-n_elems) % _LANE
    rows = (n_elems + pad) // _LANE

    # Row-tile granularity from the narrowest input dtype (f32:8, bf16:16, 8b:32)
    itemsize = min(x.dtype.itemsize for x in (mu_p, logvar_p, mu_q, logvar_q))
    row_gran = 8 * max(1, 4 // itemsize)

    # --- tile / core-split sizing (all static Python ints) -------------------
    tm_target = max(row_gran, tm_target)
    n_target = -(-rows // tm_target)                       # tiles at target size
    nc = 2 if (_num_tensorcores() == 2 and n_target >= 4) else 1
    if rows <= tm_target:
        tm, n_blocks_data, n_inner, nc = rows, 1, 1, 1     # single full block
    else:
        n_tiles = -(-n_target // nc) * nc
        tm = -(-(-(-rows // n_tiles)) // row_gran) * row_gran   # ceil, round up
        n_blocks_data = -(-rows // tm)                     # real blocks over data
        n_inner = -(-n_blocks_data // nc)
    n_grid_blocks = nc * n_inner
    need_mask = n_grid_blocks * tm != rows

    def prep(x):
        # dtype kept as-is (bf16 streams at 8 B/elem instead of 16).
        x = x.reshape(-1)
        if pad:
            # TODO(synk): ragged sizes (n % 512 != 0) still pay one relayout
            # copy; a zero-copy path would need to consume the native (..., l)
            # layout directly. Zero padding contributes exactly zero KL.
            x = jnp.pad(x, (0, pad))
        return x.reshape(rows, _LANE)

    args = [prep(x) for x in (mu_p, logvar_p, mu_q, logvar_q)]

    # Phantom grid steps (only possible when nc=2 and the real block count is
    # odd) are clamped onto the last real block and zeroed by the row mask.
    if n_grid_blocks > n_blocks_data:
        def in_idx(c, i):
            return (jnp.minimum(c * n_inner + i, n_blocks_data - 1), 0)
    else:
        def in_idx(c, i):
            return (c * n_inner + i, 0)

    in_spec = pl.BlockSpec((tm, _LANE), in_idx)
    out_spec = pl.BlockSpec((1, 8, _LANE), lambda c, i: (c, 0, 0))

    n_stream = n_grid_blocks * tm * _LANE
    cost = pl.CostEstimate(
        flops=10 * n_stream,
        transcendentals=2 * n_stream,
        bytes_accessed=sum(a.size * a.dtype.itemsize for a in args)
        + nc * 8 * _LANE * 4,
    )

    partials = pl.pallas_call(
        _make_kernel(rows, tm, n_inner, need_mask),
        out_shape=jax.ShapeDtypeStruct((nc, 8, _LANE), jnp.float32),
        grid_spec=pltpu.PrefetchScalarGridSpec(
            num_scalar_prefetch=0,
            grid=(nc, n_inner),
            in_specs=[in_spec, in_spec, in_spec, in_spec],
            out_specs=out_spec,
            scratch_shapes=[pltpu.VMEM((8, _LANE), jnp.float32)],
        ),
        compiler_params=pltpu.CompilerParams(
            dimension_semantics=("parallel", "arbitrary"),
            vmem_limit_bytes=_VMEM_LIMIT,
        ),
        cost_estimate=cost,
    )(*args)

    # Tiny final collapse + mean over rows, done once in plain JAX.
    return jnp.sum(partials) / n_rows_mean


def _reference(mu_p, logvar_p, mu_q, logvar_q):
    l = mu_p.shape[-1]
    mu_p = mu_p.reshape(-1, l)
    logvar_p = logvar_p.reshape(-1, l)
    mu_q = mu_q.reshape(-1, l)
    logvar_q = logvar_q.reshape(-1, l)
    sigma_p_sq = jnp.exp(logvar_p)
    sigma_q_sq = jnp.exp(logvar_q)
    kl = 0.5 * (sigma_q_sq / sigma_p_sq
                + (mu_p - mu_q) ** 2 / sigma_p_sq
                - 1.0
                + (logvar_p - logvar_q))
    return kl.sum(-1).mean()


def _run_case(key, shape, dtype=jnp.float32, tm_target=_TM_TARGET,
              rtol=1e-5, atol=1e-5):
    k0, k1, k2, k3 = jax.random.split(key, 4)
    mu_p = jax.random.normal(k0, shape, dtype=jnp.float32)
    logvar_p = 0.5 * jax.random.normal(k1, shape, dtype=jnp.float32)
    mu_q = jax.random.normal(k2, shape, dtype=jnp.float32)
    logvar_q = 0.5 * jax.random.normal(k3, shape, dtype=jnp.float32)
    args = [x.astype(dtype) for x in (mu_p, logvar_p, mu_q, logvar_q)]

    out = gaussian_kl_divergence_loss(*args, tm_target=tm_target)
    jax.block_until_ready(out)
    ref = _reference(*[x.astype(jnp.float32) for x in args])
    assert jnp.allclose(out, ref, rtol=rtol, atol=atol), (shape, dtype, out, ref)


if __name__ == "__main__":
    key = jax.random.PRNGKey(0)
    k0, k1, k2, k3 = jax.random.split(key, 4)

    # primary small case consistent with the module: b=2, a=4, k=16, l=32
    _run_case(k0, (2, 4, 16, 32))
    # 512-aligned case (previously forced a pad copy; now streamed unpadded)
    _run_case(k1, (2, 4, 64, 64))
    # ragged case: flat size not a multiple of 512 -> minimal tail pad
    _run_case(k2, (2, 3, 7, 5))
    # multi-tile stream with a partial last tile (small tm_target to exercise
    # the in-kernel row mask and, on 2-TC chips, the phantom-tile clamp)
    _run_case(k3, (2, 4, 100, 64), tm_target=16)
    # bf16 passthrough (halves HBM traffic; kernel upcasts per tile)
    _run_case(k0, (2, 4, 16, 32), dtype=jnp.bfloat16, rtol=1e-4, atol=1e-4)

    print("KERNEL_OK")
</pallas_src>

<mosaic_0001>
module attributes {stable_mosaic.version = 11 : i64} {
  func.func @kernel(%arg0: i32, %arg1: i32, %arg2: memref<8x512xf32, #tpu.memory_space<vmem>>, %arg3: memref<8x512xf32, #tpu.memory_space<vmem>>, %arg4: memref<8x512xf32, #tpu.memory_space<vmem>>, %arg5: memref<8x512xf32, #tpu.memory_space<vmem>>, %arg6: memref<1x8x512xf32, #tpu.memory_space<vmem>>, %arg7: memref<8x512xf32, #tpu.memory_space<vmem>>) attributes {dimension_semantics = [#tpu.dimension_semantics<parallel>, #tpu.dimension_semantics<arbitrary>], iteration_bounds = array<i64: 1, 1>, scalar_prefetch = 0 : i64, scratch_operands = 1 : i64, tpu.core_type = #tpu.core_type<tc>, window_params = [{transform_indices = @transform_0, window_bounds = array<i64: 8, 512>}, {transform_indices = @transform_1, window_bounds = array<i64: 8, 512>}, {transform_indices = @transform_2, window_bounds = array<i64: 8, 512>}, {transform_indices = @transform_3, window_bounds = array<i64: 8, 512>}, {transform_indices = @transform_4, window_bounds = array<i64: 1, 8, 512>}]} {
    %c0_i32 = arith.constant 0 : i32
    %0 = arith.cmpi eq, %arg1, %c0_i32 : i32
    %1 = arith.extui %0 : i1 to i32
    %c0_i32_0 = arith.constant 0 : i32
    %2 = arith.cmpi ne, %1, %c0_i32_0 : i32
    scf.if %2 {
      %cst_17 = arith.constant 0.000000e+00 : f32
      %29 = vector.broadcast %cst_17 : f32 to vector<8x512xf32>
      %c0_18 = arith.constant 0 : index
      %c0_19 = arith.constant 0 : index
      %30 = vector.load %arg7[%c0_18, %c0_19] : memref<8x512xf32, #tpu.memory_space<vmem>>, vector<8x512xf32>
      tpu.vector_store %arg7[%c0_18, %c0_19], %29 {strides = array<i32>} : memref<8x512xf32, #tpu.memory_space<vmem>>, vector<8x512xf32>,
    } else {
    }
    %c0 = arith.constant 0 : index
    %c0_1 = arith.constant 0 : index
    %3 = vector.load %arg2[%c0, %c0_1] : memref<8x512xf32, #tpu.memory_space<vmem>>, vector<8x512xf32>
    %c0_2 = arith.constant 0 : index
    %c0_3 = arith.constant 0 : index
    %4 = vector.load %arg3[%c0_2, %c0_3] : memref<8x512xf32, #tpu.memory_space<vmem>>, vector<8x512xf32>
    %c0_4 = arith.constant 0 : index
    %c0_5 = arith.constant 0 : index
    %5 = vector.load %arg4[%c0_4, %c0_5] : memref<8x512xf32, #tpu.memory_space<vmem>>, vector<8x512xf32>
    %c0_6 = arith.constant 0 : index
    %c0_7 = arith.constant 0 : index
    %6 = vector.load %arg5[%c0_6, %c0_7] : memref<8x512xf32, #tpu.memory_space<vmem>>, vector<8x512xf32>
    %cst = arith.constant 0.000000e+00 : f32
    %7 = vector.broadcast %cst : f32 to vector<8x512xf32>
    %8 = arith.subf %7, %4 : vector<8x512xf32>
    %9 = math.exp %8 : vector<8x512xf32>
    %10 = math.exp %6 : vector<8x512xf32>
    %11 = arith.subf %3, %5 : vector<8x512xf32>
    %12 = arith.mulf %11, %11 : vector<8x512xf32>
    %13 = arith.addf %10, %12 : vector<8x512xf32>
    %14 = arith.mulf %13, %9 : vector<8x512xf32>
    %cst_8 = arith.constant 1.000000e+00 : f32
    %15 = vector.broadcast %cst_8 : f32 to vector<8x512xf32>
    %16 = arith.subf %14, %15 : vector<8x512xf32>
    %17 = arith.subf %4, %6 : vector<8x512xf32>
    %18 = arith.addf %16, %17 : vector<8x512xf32>
    %cst_9 = arith.constant 5.000000e-01 : f32
    %19 = vector.broadcast %cst_9 : f32 to vector<8x512xf32>
    %20 = arith.mulf %19, %18 : vector<8x512xf32>
    %c0_10 = arith.constant 0 : index
    %c0_11 = arith.constant 0 : index
    %21 = vector.load %arg7[%c0_10, %c0_11] : memref<8x512xf32, #tpu.memory_space<vmem>>, vector<8x512xf32>
    %22 = vector.shape_cast %20 : vector<8x512xf32> to vector<1x8x512xf32>
    %cst_12 = arith.constant dense<0.000000e+00> : vector<8x512xf32>
    %23 = vector.multi_reduction <add>, %22, %cst_12 [0] : vector<1x8x512xf32> to vector<8x512xf32>
    %24 = arith.addf %21, %23 : vector<8x512xf32>
    %c0_13 = arith.constant 0 : index
    %c0_14 = arith.constant 0 : index
    %25 = vector.load %arg7[%c0_13, %c0_14] : memref<8x512xf32, #tpu.memory_space<vmem>>, vector<8x512xf32>
    tpu.vector_store %arg7[%c0_13, %c0_14], %24 {strides = array<i32>} : memref<8x512xf32, #tpu.memory_space<vmem>>, vector<8x512xf32>,
    %c0_i32_15 = arith.constant 0 : i32
    %26 = arith.cmpi eq, %arg1, %c0_i32_15 : i32
    %27 = arith.extui %26 : i1 to i32
    %c0_i32_16 = arith.constant 0 : i32
    %28 = arith.cmpi ne, %27, %c0_i32_16 : i32
    scf.if %28 {
      %c0_17 = arith.constant 0 : index
      %c0_18 = arith.constant 0 : index
      %29 = vector.load %arg7[%c0_17, %c0_18] : memref<8x512xf32, #tpu.memory_space<vmem>>, vector<8x512xf32>
      %c0_19 = arith.constant 0 : index
      %c0_20 = arith.constant 0 : index
      %c0_21 = arith.constant 0 : index
      %30 = vector.load %arg6[%c0_19, %c0_20, %c0_21] : memref<1x8x512xf32, #tpu.memory_space<vmem>>, vector<1x8x512xf32>
      %31 = vector.shape_cast %30 : vector<1x8x512xf32> to vector<8x512xf32>
      %32 = vector.shape_cast %29 : vector<8x512xf32> to vector<1x8x512xf32>
      tpu.vector_store %arg6[%c0_19, %c0_20, %c0_21], %32 {strides = array<i32>} : memref<1x8x512xf32, #tpu.memory_space<vmem>>, vector<1x8x512xf32>,
    } else {
    }
    return
  }
  func.func @transform_0(%arg0: i32, %arg1: i32) -> (i32, i32) {
    %c1_i32 = arith.constant 1 : i32
    %0 = arith.muli %arg0, %c1_i32 : i32
    %1 = arith.addi %0, %arg1 : i32
    %c0_i32 = arith.constant 0 : i32
    %c0_i32_0 = arith.constant 0 : i32
    return %1, %c0_i32 : i32, i32
  }
  func.func @transform_1(%arg0: i32, %arg1: i32) -> (i32, i32) {
    %c1_i32 = arith.constant 1 : i32
    %0 = arith.muli %arg0, %c1_i32 : i32
    %1 = arith.addi %0, %arg1 : i32
    %c0_i32 = arith.constant 0 : i32
    %c0_i32_0 = arith.constant 0 : i32
    return %1, %c0_i32 : i32, i32
  }
  func.func @transform_2(%arg0: i32, %arg1: i32) -> (i32, i32) {
    %c1_i32 = arith.constant 1 : i32
    %0 = arith.muli %arg0, %c1_i32 : i32
    %1 = arith.addi %0, %arg1 : i32
    %c0_i32 = arith.constant 0 : i32
    %c0_i32_0 = arith.constant 0 : i32
    return %1, %c0_i32 : i32, i32
  }
  func.func @transform_3(%arg0: i32, %arg1: i32) -> (i32, i32) {
    %c1_i32 = arith.constant 1 : i32
    %0 = arith.muli %arg0, %c1_i32 : i32
    %1 = arith.addi %0, %arg1 : i32
    %c0_i32 = arith.constant 0 : i32
    %c0_i32_0 = arith.constant 0 : i32
    return %1, %c0_i32 : i32, i32
  }
  func.func @transform_4(%arg0: i32, %arg1: i32) -> (i32, i32, i32) {
    %c0_i32 = arith.constant 0 : i32
    %c0_i32_0 = arith.constant 0 : i32
    %c0_i32_1 = arith.constant 0 : i32
    return %arg0, %c0_i32, %c0_i32_0 : i32, i32, i32
  }
}

</mosaic_0001>

<llo_original>
// kernel: tpu_custom_call.1
$region0: #{tpu_custom_call.1}
  #allocation0 [shape = 'u32[]', space=smem, size = 0x4, offset = 0x4, fixed_abs, tag = 'smem constant byte address 0x4 - core index']
  #allocation1 [shape = 'u32[72,128]{1,0:T(1,128)}', space=vmem, size = 0x9000, scoped, tag = 'internal scratch']
  #allocation2 [shape = 'f32[8,512]{1,0:T(8,128)}', space=vmem, size = 0x4000, scoped, tag = 'scratch operand']
  %s0 = inlined_call_operand.hbm [shape: f32[8,512], index: 0, kind: input, shape index: {}]
  %s1 = inlined_call_operand.hbm [shape: f32[8,512], index: 1, kind: input, shape index: {}]
  %s2 = inlined_call_operand.hbm [shape: f32[8,512], index: 2, kind: input, shape index: {}]
  %s3 = inlined_call_operand.hbm [shape: f32[8,512], index: 3, kind: input, shape index: {}]
  %s4 = inlined_call_operand.hbm [shape: f32[1,8,512], index: 4, kind: output, shape index: {}]
  %s5 = sld [smem:[#allocation0]]
  $region50: #{tpu_custom_call.1} parent=0
    _
  %s7 = ssub.s32 1, %s5
  %s8 = scalar_select 0, %s7, %s5
  $region1: #{tpu_custom_call.1} parent=0
    #allocation3 [shape = 'u8[16384]{0}', space=vmem, size = 0x4000, scoped, tag = 'input window, operand 0, single buffered']
    #allocation4 [shape = 's32[1]{0}', space=sflag, size = 0x4, scoped, tag = 'scoped memory for tpu_custom_call.1']
    #allocation5 [shape = 's32[1]{0}', space=sflag, size = 0x4, scoped, tag = 'scoped memory for tpu_custom_call.1']
    #allocation6 [shape = 'u8[16384]{0}', space=vmem, size = 0x4000, scoped, tag = 'input window, operand 1, single buffered']
    #allocation7 [shape = 's32[1]{0}', space=sflag, size = 0x4, scoped, tag = 'scoped memory for tpu_custom_call.1']
    #allocation8 [shape = 'u8[16384]{0}', space=vmem, size = 0x4000, scoped, tag = 'input window, operand 2, single buffered']
    #allocation9 [shape = 'u8[16384]{0}', space=vmem, size = 0x4000, scoped, tag = 'input window, operand 3, single buffered']
    #allocation10 [shape = 's32[1]{0}', space=sflag, size = 0x4, scoped, tag = 'scoped memory for tpu_custom_call.1']
    #allocation11 [shape = 'u8[16384]{0}', space=vmem, size = 0x4000, scoped, tag = 'output window, operand 0, single buffered']
    %9 = vsyncpa [#allocation4], 0
    %10 = vsyncpa [#allocation7], 0
    %11 = vsyncpa [#allocation10], 0
    %12 = vsyncpa [#allocation5], 0
    // Predicated region
    $region2: #{tpu_custom_call.1} parent=1 // pred_check
      _
    $region3: #{tpu_custom_call.1} parent=1 // pred_check_branch
      %14 = sbr.rel (0) target = $region5
    $region4: #{tpu_custom_call.1} parent=1 // pred_region
      %s15 = sadd.s32 0, 0
      %17 = vsyncadd [#allocation4], 0
      %s18 = smul.addr %s15, 4
      %s19 = smul.addr %s18, 8
      %s20 = scalar_lea.hbm %s0, %s19
      %s22 = sshll.u32 %s20, 4
      %s23 = int_to_ptr.hbm [resolvable:$true] %s22
      %s24 = sshll.u32 [#allocation3], 4
      %s25 = int_to_ptr.vmem [resolvable:$true] %s24
      %27 = dma.hbm_to_vmem [thread:$0]  %s23, 512, %s25, [#allocation4]
    $region5: #{tpu_custom_call.1} parent=1 // pred_fallthru
      _
    // Predicated region
    $region6: #{tpu_custom_call.1} parent=1 // pred_check
      _
    $region7: #{tpu_custom_call.1} parent=1 // pred_check_branch
      %29 = sbr.rel (0) target = $region9
    $region8: #{tpu_custom_call.1} parent=1 // pred_region
      %s30 = sadd.s32 0, 0
      %32 = vsyncadd [#allocation7], 0
      %s33 = smul.addr %s30, 4
      %s34 = smul.addr %s33, 8
      %s35 = scalar_lea.hbm %s1, %s34
      %s37 = sshll.u32 %s35, 4
      %s38 = int_to_ptr.hbm [resolvable:$true] %s37
      %s39 = sshll.u32 [#allocation6], 4
      %s40 = int_to_ptr.vmem [resolvable:$true] %s39
      %42 = dma.hbm_to_vmem [thread:$0]  %s38, 512, %s40, [#allocation7]
    $region9: #{tpu_custom_call.1} parent=1 // pred_fallthru
      _
    // Predicated region
    $region10: #{tpu_custom_call.1} parent=1 // pred_check
      _
    $region11: #{tpu_custom_call.1} parent=1 // pred_check_branch
      %44 = sbr.rel (0) target = $region13
    $region12: #{tpu_custom_call.1} parent=1 // pred_region
      %s45 = sadd.s32 0, 0
      %47 = vsyncadd [#allocation7], 0
      %s48 = smul.addr %s45, 4
      %s49 = smul.addr %s48, 8
      %s50 = scalar_lea.hbm %s2, %s49
      %s52 = sshll.u32 %s50, 4
      %s53 = int_to_ptr.hbm [resolvable:$true] %s52
      %s54 = sshll.u32 [#allocation8], 4
      %s55 = int_to_ptr.vmem [resolvable:$true] %s54
      %57 = dma.hbm_to_vmem [thread:$0]  %s53, 512, %s55, [#allocation7]
    $region13: #{tpu_custom_call.1} parent=1 // pred_fallthru
      _
    // Predicated region
    $region14: #{tpu_custom_call.1} parent=1 // pred_check
      _
    $region15: #{tpu_custom_call.1} parent=1 // pred_check_branch
      %59 = sbr.rel (0) target = $region17
    $region16: #{tpu_custom_call.1} parent=1 // pred_region
      %s60 = sadd.s32 0, 0
      %62 = vsyncadd [#allocation10], 0
      %s63 = smul.addr %s60, 4
      %s64 = smul.addr %s63, 8
      %s65 = scalar_lea.hbm %s3, %s64
      %s67 = sshll.u32 %s65, 4
      %s68 = int_to_ptr.hbm [resolvable:$true] %s67
      %s69 = sshll.u32 [#allocation9], 4
      %s70 = int_to_ptr.vmem [resolvable:$true] %s69
      %72 = dma.hbm_to_vmem [thread:$0]  %s68, 512, %s70, [#allocation10]
    $region17: #{tpu_custom_call.1} parent=1 // pred_fallthru
      _
    // Predicated region
    $region18: #{tpu_custom_call.1} parent=1 // pred_check
      _
    $region19: #{tpu_custom_call.1} parent=1 // pred_check_branch
      %74 = sbr.rel (0) target = $region21
    $region20: #{tpu_custom_call.1} parent=1 // pred_region
      %76 = dma.done [#allocation4], 512
    $region21: #{tpu_custom_call.1} parent=1 // pred_fallthru
      _
    // Predicated region
    $region22: #{tpu_custom_call.1} parent=1 // pred_check
      _
    $region23: #{tpu_custom_call.1} parent=1 // pred_check_branch
      %78 = sbr.rel (0) target = $region25
    $region24: #{tpu_custom_call.1} parent=1 // pred_region
      %80 = dma.done [#allocation7], 512
    $region25: #{tpu_custom_call.1} parent=1 // pred_fallthru
      _
    // Predicated region
    $region26: #{tpu_custom_call.1} parent=1 // pred_check
      _
    $region27: #{tpu_custom_call.1} parent=1 // pred_check_branch
      %82 = sbr.rel (0) target = $region29
    $region28: #{tpu_custom_call.1} parent=1 // pred_region
      %84 = dma.done [#allocation7], 512
    $region29: #{tpu_custom_call.1} parent=1 // pred_fallthru
      _
    // Predicated region
    $region30: #{tpu_custom_call.1} parent=1 // pred_check
      _
    $region31: #{tpu_custom_call.1} parent=1 // pred_check_branch
      %86 = sbr.rel (0) target = $region33
    $region32: #{tpu_custom_call.1} parent=1 // pred_region
      %88 = dma.done [#allocation10], 512
    $region33: #{tpu_custom_call.1} parent=1 // pred_fallthru
      _
    %s89 = sadd.s32 0, 0
    %s90 = sadd.s32 0, 0
    %s91 = sadd.s32 0, 0
    %s92 = sadd.s32 0, 0
    %p93 = scmp.eq.s32.totalorder 0, 0
    // Predicated region
    $region34: #{tpu_custom_call.1} parent=1 // pred_check
      %p94 = pneg %p93
    $region35: #{tpu_custom_call.1} parent=1 // pred_check_branch
      %96 = sbr.rel (%p94) target = $region37
    $region36: #{tpu_custom_call.1} parent=1 // pred_region
      %97 = vst [vmem:[#allocation2] sm:$0xff] 0.0
      %98 = vst [vmem:[#allocation2 + $0x8] sm:$0xff] 0.0
      %99 = vst [vmem:[#allocation2 + $0x10] sm:$0xff] 0.0
      %100 = vst [vmem:[#allocation2 + $0x18] sm:$0xff] 0.0
    $region37: #{tpu_custom_call.1} parent=1 // pred_fallthru
      _
    %v101 = vld [vmem:[#allocation3] sm:$0xff]
    %v102 = vld [vmem:[#allocation3 + $0x8] sm:$0xff]
    %v103 = vld [vmem:[#allocation3 + $0x10] sm:$0xff]
    %v104 = vld [vmem:[#allocation3 + $0x18] sm:$0xff]
    %v105 = vld [vmem:[#allocation6] sm:$0xff]
    %v106 = vld [vmem:[#allocation6 + $0x8] sm:$0xff]
    %v107 = vld [vmem:[#allocation6 + $0x10] sm:$0xff]
    %v108 = vld [vmem:[#allocation6 + $0x18] sm:$0xff]
    %v109 = vld [vmem:[#allocation8] sm:$0xff]
    %v110 = vld [vmem:[#allocation8 + $0x8] sm:$0xff]
    %v111 = vld [vmem:[#allocation8 + $0x10] sm:$0xff]
    %v112 = vld [vmem:[#allocation8 + $0x18] sm:$0xff]
    %v113 = vld [vmem:[#allocation9] sm:$0xff]
    %v114 = vld [vmem:[#allocation9 + $0x8] sm:$0xff]
    %v115 = vld [vmem:[#allocation9 + $0x10] sm:$0xff]
    %v116 = vld [vmem:[#allocation9 + $0x18] sm:$0xff]
    %v117 = vsub.f32 0.0, %v105
    %v118 = vsub.f32 0.0, %v106
    %v119 = vsub.f32 0.0, %v107
    %v120 = vsub.f32 0.0, %v108
    %v121 = vmul.f32 %v117, 1.442695
    %v122 = vpow.pop %v121
    %v123 = vmul.f32 %v118, 1.442695
    %v124 = vpow.pop %v123
    %v125 = vmul.f32 %v119, 1.442695
    %v126 = vpow.pop %v125
    %v127 = vmul.f32 %v120, 1.442695
    %v128 = vpow.pop %v127
    %v129 = vmul.f32 %v113, 1.442695
    %v130 = vpow.pop %v129
    %v131 = vmul.f32 %v114, 1.442695
    %v132 = vpow.pop %v131
    %v133 = vmul.f32 %v115, 1.442695
    %v134 = vpow.pop %v133
    %v135 = vmul.f32 %v116, 1.442695
    %v136 = vpow.pop %v135
    %v137 = vsub.f32 %v101, %v109
    %v138 = vsub.f32 %v102, %v110
    %v139 = vsub.f32 %v103, %v111
    %v140 = vsub.f32 %v104, %v112
    %v141 = vmul.f32 %v137, %v137
    %v142 = vmul.f32 %v138, %v138
    %v143 = vmul.f32 %v139, %v139
    %v144 = vmul.f32 %v140, %v140
    %v145 = vadd.f32 %v130, %v141
    %v146 = vadd.f32 %v132, %v142
    %v147 = vadd.f32 %v134, %v143
    %v148 = vadd.f32 %v136, %v144
    %v149 = vmul.f32 %v145, %v122
    %v150 = vmul.f32 %v146, %v124
    %v151 = vmul.f32 %v147, %v126
    %v152 = vmul.f32 %v148, %v128
    %v153 = vsub.f32 %v149, 1.0
    %v154 = vsub.f32 %v150, 1.0
    %v155 = vsub.f32 %v151, 1.0
    %v156 = vsub.f32 %v152, 1.0
    %v157 = vsub.f32 %v105, %v113
    %v158 = vsub.f32 %v106, %v114
    %v159 = vsub.f32 %v107, %v115
    %v160 = vsub.f32 %v108, %v116
    %v161 = vadd.f32 %v153, %v157
    %v162 = vadd.f32 %v154, %v158
    %v163 = vadd.f32 %v155, %v159
    %v164 = vadd.f32 %v156, %v160
    %v165 = vmul.f32 %v161, 0.5
    %v166 = vmul.f32 %v162, 0.5
    %v167 = vmul.f32 %v163, 0.5
    %v168 = vmul.f32 %v164, 0.5
    %v169 = vld [vmem:[#allocation2] sm:$0xff]
    %v170 = vld [vmem:[#allocation2 + $0x8] sm:$0xff]
    %v171 = vld [vmem:[#allocation2 + $0x10] sm:$0xff]
    %v172 = vld [vmem:[#allocation2 + $0x18] sm:$0xff]
    %v173 = vadd.f32 %v165, 0.0
    %v174 = vadd.f32 %v166, 0.0
    %v175 = vadd.f32 %v167, 0.0
    %v176 = vadd.f32 %v168, 0.0
    %v177 = vadd.f32 %v169, %v173
    %v178 = vadd.f32 %v170, %v174
    %v179 = vadd.f32 %v171, %v175
    %v180 = vadd.f32 %v172, %v176
    %181 = vst [vmem:[#allocation2] sm:$0xff] %v177
    %182 = vst [vmem:[#allocation2 + $0x8] sm:$0xff] %v178
    %183 = vst [vmem:[#allocation2 + $0x10] sm:$0xff] %v179
    %184 = vst [vmem:[#allocation2 + $0x18] sm:$0xff] %v180
    // Predicated region
    $region38: #{tpu_custom_call.1} parent=1 // pred_check
      %p185 = pneg %p93
    $region39: #{tpu_custom_call.1} parent=1 // pred_check_branch
      %187 = sbr.rel (%p185) target = $region41
    $region40: #{tpu_custom_call.1} parent=1 // pred_region
      %v188 = vld [vmem:[#allocation2] sm:$0xff]
      %v189 = vld [vmem:[#allocation2 + $0x8] sm:$0xff]
      %v190 = vld [vmem:[#allocation2 + $0x10] sm:$0xff]
      %v191 = vld [vmem:[#allocation2 + $0x18] sm:$0xff]
      %192 = vst [vmem:[#allocation11] sm:$0xff] %v188
      %193 = vst [vmem:[#allocation11 + $0x8] sm:$0xff] %v189
      %194 = vst [vmem:[#allocation11 + $0x10] sm:$0xff] %v190
      %195 = vst [vmem:[#allocation11 + $0x18] sm:$0xff] %v191
    $region41: #{tpu_custom_call.1} parent=1 // pred_fallthru
      _
    // Predicated region
    $region42: #{tpu_custom_call.1} parent=1 // pred_check
      _
    $region43: #{tpu_custom_call.1} parent=1 // pred_check_branch
      %197 = sbr.rel (0) target = $region45
    $region44: #{tpu_custom_call.1} parent=1 // pred_region
      %199 = vsyncadd [#allocation5], 0
      %s201 = sshll.u32 [#allocation11], 4
      %s202 = int_to_ptr.vmem [resolvable:$true] %s201
      %s203 = sshll.u32 %s4, 4
      %s204 = int_to_ptr.hbm [resolvable:$true] %s203
      %206 = dma.vmem_to_hbm [thread:$0]  %s202, 512, %s204, [#allocation5]
    $region45: #{tpu_custom_call.1} parent=1 // pred_fallthru
      _
    // Predicated region
    $region46: #{tpu_custom_call.1} parent=1 // pred_check
      _
    $region47: #{tpu_custom_call.1} parent=1 // pred_check_branch
      %208 = sbr.rel (0) target = $region49
    $region48: #{tpu_custom_call.1} parent=1 // pred_region
      %210 = dma.done [#allocation5], 512
    $region49: #{tpu_custom_call.1} parent=1 // pred_fallthru
      _
    %211 = vsyncpa [#allocation4], 1
    %212 = vsyncpa [#allocation7], 1
    %213 = vsyncpa [#allocation10], 1
    %214 = vsyncpa [#allocation5], 1

</llo_original>
